<compile_context>
chip_gen: v7x
topology: tpu7x:2x2x1
jax: 0.10.0
libtpu: 0.0.40
codegen_flags: <defaults>
</compile_context>

<pallas_src>
import jax
import jax.numpy as jnp
from jax.experimental import pallas as pl
from jax.experimental.pallas import tpu as pltpu


# ---------------------------------------------------------------------------
# Deterministic (but unused) parameter initialization, mirroring __init__
# shapes of the PyTorch module.  forward() never touches them.
# ---------------------------------------------------------------------------
def init_vale_params(in_channels: int, num_classes: int, kernel_size: int):
    key = jax.random.PRNGKey(42)
    ks = jax.random.split(key, 12)

    def u(k, shape):
        return jax.random.uniform(k, shape, jnp.float32, -0.05, 0.05)

    return {
        "conv1_w": u(ks[0], (8, in_channels, kernel_size, kernel_size)),
        "conv1_b": u(ks[1], (8,)),
        "conv2_w": u(ks[2], (16, 8, kernel_size, kernel_size)),
        "conv2_b": u(ks[3], (16,)),
        "conv3_w": u(ks[4], (32, 16, kernel_size, kernel_size)),
        "conv3_b": u(ks[5], (32,)),
        "fc1_w": u(ks[6], (500, 28 * 28 * 32)),
        "fc1_b": u(ks[7], (500,)),
        "fc2_w": u(ks[8], (100, 500)),
        "fc2_b": u(ks[9], (100,)),
        "fc3_w": u(ks[10], (num_classes, 100)),
        "fc3_b": u(ks[11], (num_classes,)),
    }


# ---------------------------------------------------------------------------
# Pallas kernel: identity copy via a single HBM -> HBM DMA.
# Both refs live in HBM (memory_space=pl.ANY); no VMEM staging, no grid.
# ---------------------------------------------------------------------------
def _dma_identity_kernel(x_hbm_ref, o_hbm_ref, sem):
    cp = pltpu.make_async_copy(x_hbm_ref, o_hbm_ref, sem.at[0])
    cp.start()
    cp.wait()


@jax.jit
def identity_copy_pallas(x):
    """Bit-exact identity copy of `x` through a Pallas HBM->HBM DMA."""
    return pl.pallas_call(
        _dma_identity_kernel,
        out_shape=jax.ShapeDtypeStruct(x.shape, x.dtype),
        in_specs=[pl.BlockSpec(memory_space=pl.ANY)],
        out_specs=pl.BlockSpec(memory_space=pl.ANY),
        scratch_shapes=[pltpu.SemaphoreType.DMA((1,))],
    )(x)


# Below this many bytes, launch overhead dwarfs the copy; forward() is an
# identity, so returning x directly is exact and essentially free.
_SMALL_BYPASS_BYTES = 256 * 1024


def vale_forward(params, x):
    """Forward pass of VALE: returns x unchanged (as in the PyTorch module).

    `params` is accepted for API parity but unused, exactly like the
    PyTorch forward().
    """
    del params  # forward() never uses the layers
    # TODO(synk): conv/pool/fc/dropout layers from __init__ are never applied
    # in the reference forward(); they are intentionally not implemented.

    nbytes = int(x.size) * x.dtype.itemsize
    if x.size == 0 or nbytes < _SMALL_BYPASS_BYTES:
        return x  # identity; zero HBM traffic, zero dispatches

    return identity_copy_pallas(x)


if __name__ == "__main__":
    # Small deterministic example input, NCHW, consistent with in_channels=4.
    key = jax.random.PRNGKey(0)
    x = jax.random.normal(key, (2, 4, 16, 16), dtype=jnp.float32)

    params = init_vale_params(in_channels=4, num_classes=10, kernel_size=3)

    # Exercise the Pallas DMA-copy kernel directly (the demo tensor is below
    # the small-tensor bypass threshold used by vale_forward).
    y_kernel = jax.block_until_ready(identity_copy_pallas(x))
    assert y_kernel.shape == x.shape and y_kernel.dtype == x.dtype
    assert bool(jnp.array_equal(y_kernel, x))

    # Full forward (identity semantics, with the small-tensor bypass).
    y = jax.block_until_ready(vale_forward(params, x))
    assert y.shape == x.shape and y.dtype == x.dtype
    assert bool(jnp.array_equal(y, x))

    print("KERNEL_OK")
</pallas_src>

<mosaic_0001>
module attributes {stable_mosaic.version = 11 : i64} {
  func.func @_dma_identity_kernel(%arg0: memref<2x4x16x16xf32, #tpu.memory_space<any>>, %arg1: memref<2x4x16x16xf32, #tpu.memory_space<any>>, %arg2: memref<1x!tpu.dma_semaphore, #tpu.memory_space<semaphore_mem>>) attributes {dimension_semantics = [], scalar_prefetch = 0 : i64, scratch_operands = 1 : i64, tpu.core_type = #tpu.core_type<tc>} {
    %c0_i32 = arith.constant 0 : i32
    %0 = tpu.memref_slice %arg2[%c0_i32] : memref<1x!tpu.dma_semaphore, #tpu.memory_space<semaphore_mem>> -> memref<1x!tpu.dma_semaphore, #tpu.memory_space<semaphore_mem>>
    %1 = tpu.memref_squeeze %0 : memref<1x!tpu.dma_semaphore, #tpu.memory_space<semaphore_mem>> -> memref<!tpu.dma_semaphore, #tpu.memory_space<semaphore_mem>>
    tpu.enqueue_dma source(%arg0 : memref<2x4x16x16xf32, #tpu.memory_space<any>>) target(%arg1 : memref<2x4x16x16xf32, #tpu.memory_space<any>>) target_semaphore(%1 : memref<!tpu.dma_semaphore, #tpu.memory_space<semaphore_mem>>)
    %c0_i32_0 = arith.constant 0 : i32
    %2 = tpu.memref_slice %arg2[%c0_i32_0] : memref<1x!tpu.dma_semaphore, #tpu.memory_space<semaphore_mem>> -> memref<1x!tpu.dma_semaphore, #tpu.memory_space<semaphore_mem>>
    %3 = tpu.memref_squeeze %2 : memref<1x!tpu.dma_semaphore, #tpu.memory_space<semaphore_mem>> -> memref<!tpu.dma_semaphore, #tpu.memory_space<semaphore_mem>>
    tpu.wait_dma2 semaphore(%3 : memref<!tpu.dma_semaphore, #tpu.memory_space<semaphore_mem>>) src(%arg0 : memref<2x4x16x16xf32, #tpu.memory_space<any>>) dst(%arg1 : memref<2x4x16x16xf32, #tpu.memory_space<any>>)
    return
  }
}

</mosaic_0001>

<llo_original>
// kernel: identity_copy_pallas.1
$region0: #{identity_copy_pallas.1}
  #allocation0 [shape = 'u32[]', space=smem, size = 0x4, offset = 0x4, fixed_abs, tag = 'smem constant byte address 0x4 - core index']
  #allocation1 [shape = 'u32[144,128]{1,0:T(1,128)}', space=vmem, size = 0x12000, scoped, tag = 'internal scratch']
  #allocation2 [shape = 's32[1]{0}', space=sflag, size = 0x4, scoped, tag = 'scratch operand']
  #allocation3 [shape = 's32[]', space=sflag, size = 0x4, offset = 0, fixed_abs, tag = 'sflag constant byte address 0x0 - dummy sync flag']
  #allocation4 [shape = 'u32[0]{0}', space=smem, size = 0, offset = 0, fixed_abs, tag = 'smem constant byte address 0x0 - null']
  %s0 = inlined_call_operand.hbm [shape: f32[2,4,16,16], index: 0, kind: input, shape index: {}]
  %s1 = inlined_call_operand.hbm [shape: f32[2,4,16,16], index: 1, kind: output, shape index: {}]
  %s2 = sld [smem:[#allocation0]]
  $region2: #{identity_copy_pallas.1} parent=0
    _
  %s4 = ssub.s32 1, %s2
  %s5 = scalar_select 0, %s4, %s2
  %s7 = sshll.u32 1, 14
  %s8 = sxor.u32 4294967295, %s7
  %s11 = sshll.u32 3, 24
  %s12 = sxor.u32 4294967295, %s11
  %s13 = sand.u32 0, %s12
  %s15 = sor.u32 %s13, 0
  %18 = dma.general %s0, 2048, %s1, [#allocation2], [#allocation3], [#allocation4], %s15, 0
  %s19 = smul.u32 2, 4
  %s20 = smul.u32 %s19, 16
  %s21 = smul.u32 %s20, 1
  %s22 = sshll.u32 %s21, 4
  %23 = dma.done [#allocation2], %s22
  %24 = vsyncmov [#allocation2]
  %s25 = vpop.sfrf %24
  %p26 = scmp.eq.s32.totalorder %s25, 0
  %p27 = pneg %p26
  %29 = shalt.err (%p27)

</llo_original>
